<compile_context>
chip_gen: v7x
topology: tpu7x:2x2x1
jax: 0.10.0
libtpu: 0.0.40
codegen_flags: <defaults>
</compile_context>

<pallas_src>
import jax
import jax.numpy as jnp
from jax.experimental import pallas as pl
from jax.experimental.pallas import tpu as pltpu

LANE = 128             # TPU lane width (last dim)
SUBLANE = 8            # f32 sublane count
MIN_BLOCK_ROWS = 256   # keep per-step DMA big enough (~85% roofline by 512 rows)
MAX_BLOCK_ROWS = 2048  # (2, 2048, 128) f32 block = 2 MiB; in+out, double-buffered = 8 MiB
TARGET_STEPS = 8       # aim for ~8 grid steps -> DMA/compute overlap + both v7x TCs


def volterra_kernel(w_ref, y_ref, o_ref):
    # w_ref: SMEM (4,) f32          -> w1, w2, w3, w4
    # y_ref: VMEM (2, TB, 128) f32  -> [0] = x slab, [1] = y slab (dense tiles)
    # o_ref: VMEM (2, TB, 128) f32  -> [0] = a1,     [1] = a2
    w1 = w_ref[0]
    w2 = w_ref[1]
    w3 = w_ref[2]
    w4 = w_ref[3]
    x = y_ref[0]                                         # (TB, 128) full-vreg load
    y = y_ref[1]
    o_ref[0] = (x * (w1 - w2 * y)).astype(o_ref.dtype)   # a1
    # a2 = -y*(w3 - w4*x) == y*(w4*x - w3): one fewer VPU op per vreg.
    o_ref[1] = (y * (w4 * x - w3)).astype(o_ref.dtype)   # a2


def _round_up(a, b):
    return ((a + b - 1) // b) * b


def _choose_tb(rows):
    """Sublane tile (multiple of 8) giving ~TARGET_STEPS grid steps, never > data."""
    tb = _round_up(pl.cdiv(rows, TARGET_STEPS), SUBLANE)
    tb = max(MIN_BLOCK_ROWS, tb)
    return min(tb, MAX_BLOCK_ROWS, rows)


def func_forward_padded(t, Y3, weights):
    """RHS evaluation on a state kept permanently in (2, R, 128) layout.

    Y3: (2, R, 128) f32 with R a multiple of 8.  Returns (2, R, 128).
    Zero-relayout entry point for use inside an integrator loop.
    """
    del t  # unused in the reference forward
    two, rows, lane = Y3.shape
    assert two == 2 and lane == LANE and rows % SUBLANE == 0
    # TODO(synk): bf16 state would halve HBM bytes, but needs (16,128) tiles
    # and an f32 upcast in-kernel (v5e has no bf16 VPU); f32-only here.
    tb = _choose_tb(rows)
    grid = (pl.cdiv(rows, tb),)  # last block may be partial -> Pallas masks it

    return pl.pallas_call(
        volterra_kernel,
        out_shape=jax.ShapeDtypeStruct((2, rows, LANE), Y3.dtype),
        grid=grid,
        in_specs=[
            # 4 scalar weights, untiled, in scalar memory.
            pl.BlockSpec(memory_space=pltpu.MemorySpace.SMEM),
            # (2, TB, 128) lane-dense tile of the state.
            pl.BlockSpec((2, tb, LANE), lambda i: (0, i, 0)),
        ],
        out_specs=pl.BlockSpec((2, tb, LANE), lambda i: (0, i, 0)),
        compiler_params=pltpu.CompilerParams(
            dimension_semantics=("parallel",),
        ),
    )(weights, Y3)


def func_forward(t, Y, weights):
    """Pallas implementation of Func.forward(t, Y).

    t is accepted (and ignored) to match the PyTorch signature.
    Y: (2, N) float32. weights: (4,) float32 = [w1, w2, w3, w4].
    Returns: (2*N,) float32 == torch.cat((a1, a2), 0).
    """
    two, n = Y.shape
    assert two == 2, "Y must have leading dim 2 (x, y)"
    if n == 0:
        return jnp.zeros((0,), Y.dtype)

    # Pad only up to the next (8, 128) slab boundary (<= 1023 elements), and
    # skip the pad/slice entirely when N is already aligned.
    n_pad = _round_up(n, SUBLANE * LANE)
    Yp = Y if n_pad == n else jnp.pad(Y, ((0, 0), (0, n_pad - n)))
    rows = n_pad // LANE

    out3 = func_forward_padded(t, Yp.reshape(2, rows, LANE), weights)

    if n_pad == n:
        return out3.reshape(2 * n)
    return out3.reshape(2, n_pad)[:, :n].reshape(2 * n)


def func_forward_ref(t, Y, weights):
    """Pure-JAX reference mirroring the PyTorch module exactly."""
    del t
    w1, w2, w3, w4 = weights[0], weights[1], weights[2], weights[3]
    x, y = Y[0], Y[1]
    a1 = x * (w1 - w2 * y)
    a2 = -y * (w3 - w4 * x)
    return jnp.concatenate((a1, a2), axis=0)


if __name__ == "__main__":
    key = jax.random.PRNGKey(0)
    # Parameters: nn.Parameter(torch.ones(1)) x 4 -> deterministic ones.
    weights = jnp.ones((4,), dtype=jnp.float32)
    t = jnp.float32(0.0)  # unused, matches signature

    # TODO(synk): if this RHS is driven inside an ODE/symplectic integrator
    # loop at small N, fuse the whole integrator step (or batch trajectories)
    # into one pallas_call and keep the state in the (2, R, 128) layout via
    # func_forward_padded; only the single forward is implemented here.
    fwd = jax.jit(func_forward)

    # N=1000: exercises the padded wrapper path (N not a multiple of 128).
    # N=2048: aligned path, no pad / no slice.
    # N=33792: rows=264, tb=256, grid=2 -> exercises the masked partial block.
    for i, N in enumerate((1000, 2048, 33792)):
        Y = jax.random.uniform(jax.random.fold_in(key, i), (2, N), dtype=jnp.float32)
        out = jax.block_until_ready(fwd(t, Y, weights))
        ref = func_forward_ref(t, Y, weights)
        assert out.shape == (2 * N,)
        assert jnp.allclose(out, ref, atol=1e-6, rtol=1e-6)

    print("KERNEL_OK")
</pallas_src>

<mosaic_0001>
module attributes {stable_mosaic.version = 11 : i64} {
  func.func @volterra_kernel(%arg0: i32, %arg1: memref<4xf32, #tpu.memory_space<smem>>, %arg2: memref<2x8x128xf32, #tpu.memory_space<vmem>>, %arg3: memref<2x8x128xf32, #tpu.memory_space<vmem>>) attributes {dimension_semantics = [#tpu.dimension_semantics<parallel>], iteration_bounds = array<i64: 1>, scalar_prefetch = 0 : i64, scratch_operands = 0 : i64, tpu.core_type = #tpu.core_type<tc>, window_params = [{transform_indices = @transform_0, window_bounds = array<i64: 4>}, {transform_indices = @transform_1, window_bounds = array<i64: 2, 8, 128>}, {transform_indices = @transform_2, window_bounds = array<i64: 2, 8, 128>}]} {
    %c0 = arith.constant 0 : index
    %0 = memref.load %arg1[%c0] : memref<4xf32, #tpu.memory_space<smem>>
    %c1 = arith.constant 1 : index
    %1 = memref.load %arg1[%c1] : memref<4xf32, #tpu.memory_space<smem>>
    %c2 = arith.constant 2 : index
    %2 = memref.load %arg1[%c2] : memref<4xf32, #tpu.memory_space<smem>>
    %c3 = arith.constant 3 : index
    %3 = memref.load %arg1[%c3] : memref<4xf32, #tpu.memory_space<smem>>
    %c0_0 = arith.constant 0 : index
    %c0_1 = arith.constant 0 : index
    %c0_2 = arith.constant 0 : index
    %4 = vector.load %arg2[%c0_0, %c0_1, %c0_2] : memref<2x8x128xf32, #tpu.memory_space<vmem>>, vector<1x8x128xf32>
    %5 = vector.shape_cast %4 : vector<1x8x128xf32> to vector<8x128xf32>
    %c1_3 = arith.constant 1 : index
    %c0_4 = arith.constant 0 : index
    %c0_5 = arith.constant 0 : index
    %6 = vector.load %arg2[%c1_3, %c0_4, %c0_5] : memref<2x8x128xf32, #tpu.memory_space<vmem>>, vector<1x8x128xf32>
    %7 = vector.shape_cast %6 : vector<1x8x128xf32> to vector<8x128xf32>
    %8 = vector.broadcast %1 : f32 to vector<8x128xf32>
    %9 = arith.mulf %8, %7 : vector<8x128xf32>
    %10 = vector.broadcast %0 : f32 to vector<8x128xf32>
    %11 = arith.subf %10, %9 : vector<8x128xf32>
    %12 = arith.mulf %5, %11 : vector<8x128xf32>
    %c0_6 = arith.constant 0 : index
    %c0_7 = arith.constant 0 : index
    %c0_8 = arith.constant 0 : index
    %13 = vector.load %arg3[%c0_6, %c0_7, %c0_8] : memref<2x8x128xf32, #tpu.memory_space<vmem>>, vector<1x8x128xf32>
    %14 = vector.shape_cast %13 : vector<1x8x128xf32> to vector<8x128xf32>
    %15 = vector.shape_cast %12 : vector<8x128xf32> to vector<1x8x128xf32>
    tpu.vector_store %arg3[%c0_6, %c0_7, %c0_8], %15 {strides = array<i32>} : memref<2x8x128xf32, #tpu.memory_space<vmem>>, vector<1x8x128xf32>,
    %16 = vector.broadcast %3 : f32 to vector<8x128xf32>
    %17 = arith.mulf %16, %5 : vector<8x128xf32>
    %18 = vector.broadcast %2 : f32 to vector<8x128xf32>
    %19 = arith.subf %17, %18 : vector<8x128xf32>
    %20 = arith.mulf %7, %19 : vector<8x128xf32>
    %c1_9 = arith.constant 1 : index
    %c0_10 = arith.constant 0 : index
    %c0_11 = arith.constant 0 : index
    %21 = vector.load %arg3[%c1_9, %c0_10, %c0_11] : memref<2x8x128xf32, #tpu.memory_space<vmem>>, vector<1x8x128xf32>
    %22 = vector.shape_cast %21 : vector<1x8x128xf32> to vector<8x128xf32>
    %23 = vector.shape_cast %20 : vector<8x128xf32> to vector<1x8x128xf32>
    tpu.vector_store %arg3[%c1_9, %c0_10, %c0_11], %23 {strides = array<i32>} : memref<2x8x128xf32, #tpu.memory_space<vmem>>, vector<1x8x128xf32>,
    return
  }
  func.func @transform_0(%arg0: i32) -> i32 {
    %c0_i32 = arith.constant 0 : i32
    %c0_i32_0 = arith.constant 0 : i32
    return %c0_i32 : i32
  }
  func.func @transform_1(%arg0: i32) -> (i32, i32, i32) {
    %c0_i32 = arith.constant 0 : i32
    %c0_i32_0 = arith.constant 0 : i32
    %c0_i32_1 = arith.constant 0 : i32
    return %c0_i32, %arg0, %c0_i32_0 : i32, i32, i32
  }
  func.func @transform_2(%arg0: i32) -> (i32, i32, i32) {
    %c0_i32 = arith.constant 0 : i32
    %c0_i32_0 = arith.constant 0 : i32
    %c0_i32_1 = arith.constant 0 : i32
    return %c0_i32, %arg0, %c0_i32_0 : i32, i32, i32
  }
}

</mosaic_0001>

<llo_original>
// kernel: func_forward.1
$region0: #{func_forward.1}
  #allocation0 [shape = 'u32[]', space=smem, size = 0x4, offset = 0x4, fixed_abs, tag = 'smem constant byte address 0x4 - core index']
  #allocation1 [shape = 'u32[144,128]{1,0:T(1,128)}', space=vmem, size = 0x12000, scoped, tag = 'internal scratch']
  %s0 = inlined_call_operand.vmem [shape: f32[4], index: 0, kind: input, shape index: {}]
  %s1 = inlined_call_operand.vmem [shape: f32[2,8,128], index: 1, kind: input, shape index: {}]
  %s2 = inlined_call_operand.vmem [shape: f32[2,8,128], index: 2, kind: output, shape index: {}]
  %s3 = sld [smem:[#allocation0]]
  $region22: #{func_forward.1} parent=0
    _
  %s5 = ssub.s32 1, %s3
  %s6 = scalar_select 0, %s5, %s3
  $region1: #{func_forward.1} parent=0
    #allocation2 [shape = 'u8[512]{0}', space=smem, size = 0x200, scoped, tag = 'input window, operand 0, single buffered']
    #allocation3 [shape = 's32[1]{0}', space=sflag, size = 0x4, scoped, tag = 'scoped memory for func_forward.1']
    %7 = vsyncpa [#allocation3], 0
    // Predicated region
    $region2: #{func_forward.1} parent=1 // pred_check
      _
    $region3: #{func_forward.1} parent=1 // pred_check_branch
      %9 = sbr.rel (0) target = $region5
    $region4: #{func_forward.1} parent=1 // pred_region
      %s11 = ssub.s32 16, 16
      %12 = vsyncadd [#allocation3], %s11
      %s14 = sshll.u32 %s0, 4
      %s15 = int_to_ptr.vmem [resolvable:$true] %s14
      %17 = dma.vmem_to_smem %s15, 16, [#allocation2], [#allocation3]
    $region5: #{func_forward.1} parent=1 // pred_fallthru
      _
    // Predicated region
    $region6: #{func_forward.1} parent=1 // pred_check
      _
    $region7: #{func_forward.1} parent=1 // pred_check_branch
      %19 = sbr.rel (0) target = $region9
    $region8: #{func_forward.1} parent=1 // pred_region
      _
    $region9: #{func_forward.1} parent=1 // pred_fallthru
      _
    // Predicated region
    $region10: #{func_forward.1} parent=1 // pred_check
      _
    $region11: #{func_forward.1} parent=1 // pred_check_branch
      %21 = sbr.rel (0) target = $region13
    $region12: #{func_forward.1} parent=1 // pred_region
      %22 = dma.done [#allocation3], 16
    $region13: #{func_forward.1} parent=1 // pred_fallthru
      _
    %23 = sfence
    %s24 = sld [smem:[#allocation2]]
    %s25 = sld [smem:[#allocation2 + $0x1]]
    %s26 = sld [smem:[#allocation2 + $0x2]]
    %s27 = sld [smem:[#allocation2 + $0x3]]
    %v28 = vld [vmem:[%s1] sm:$0xff]
    %s29 = scalar_lea.vmem %s1, 8
    %v30 = vld [vmem:[%s29] sm:$0xff]
    %v31 = vstv %s25
    %v32 = vmul.f32 %v31, %v30
    %v33 = vstv %s24
    %v34 = vsub.f32 %v33, %v32
    %v35 = vmul.f32 %v28, %v34
    %36 = vst [vmem:[%s2] sm:$0xff] %v35
    %v37 = vstv %s27
    %v38 = vmul.f32 %v37, %v28
    %v39 = vstv %s26
    %v40 = vsub.f32 %v38, %v39
    %v41 = vmul.f32 %v30, %v40
    %s42 = scalar_lea.vmem %s2, 8
    %43 = vst [vmem:[%s42] sm:$0xff] %v41
    // Predicated region
    $region14: #{func_forward.1} parent=1 // pred_check
      _
    $region15: #{func_forward.1} parent=1 // pred_check_branch
      %45 = sbr.rel (0) target = $region17
    $region16: #{func_forward.1} parent=1 // pred_region
      _
    $region17: #{func_forward.1} parent=1 // pred_fallthru
      _
    // Predicated region
    $region18: #{func_forward.1} parent=1 // pred_check
      _
    $region19: #{func_forward.1} parent=1 // pred_check_branch
      %47 = sbr.rel (0) target = $region21
    $region20: #{func_forward.1} parent=1 // pred_region
      _
    $region21: #{func_forward.1} parent=1 // pred_fallthru
      _
    %48 = vsyncpa [#allocation3], 1

</llo_original>
